<compile_context>
chip_gen: v6e
topology: v6e:2x2x1
jax: 0.10.0
libtpu: 0.0.40
codegen_flags: <defaults>
</compile_context>

<pallas_src>
import functools

import jax
import jax.numpy as jnp
from jax.experimental import pallas as pl
from jax.experimental.pallas import tpu as pltpu


# ----------------------------------------------------------------------------
# Path A: table resident in a single-buffered VMEM scratch (copied once),
#         rows gathered with VMEM-local dynamic row reads.
# ----------------------------------------------------------------------------
def _resident_gather_kernel(idx_ref, emb_hbm, out_ref, table_vmem, sem, *,
                            rows_per_step):
    i = pl.program_id(0)

    # One-shot HBM -> VMEM copy of the whole embedding table. The grid axis is
    # "arbitrary" (sequential on one core), so program_id(0) == 0 is always
    # the first executed step and table_vmem persists across iterations.
    @pl.when(i == 0)
    def _():
        cp = pltpu.make_async_copy(emb_hbm, table_vmem, sem.at[0])
        cp.start()
        cp.wait()

    base = pl.multiple_of(i * rows_per_step, rows_per_step)
    for r in range(rows_per_step):                 # static unroll (R <= 64)
        row = idx_ref[base + r]                    # scalar read from SMEM
        out_ref[pl.ds(r, 1), :] = table_vmem[pl.ds(row, 1), :]


# ----------------------------------------------------------------------------
# Path B: table stays in HBM; R row DMAs per step into a double-buffered
#         VMEM scratch, prefetched one grid step ahead.
# ----------------------------------------------------------------------------
def _hbm_gather_kernel(idx_ref, emb_hbm, out_ref, scratch, sems, *,
                       rows_per_step, steps_per_chunk):
    p = pl.program_id(0)                 # chunk (parallel across cores)
    j = pl.program_id(1)                 # step within chunk (sequential)
    step = p * steps_per_chunk + j
    slot = j % 2

    def start_rows(global_step, dst_slot):
        base = pl.multiple_of(global_step * rows_per_step, rows_per_step)
        for r in range(rows_per_step):   # static unroll: R copies in flight
            row = idx_ref[base + r]
            pltpu.make_async_copy(
                emb_hbm.at[pl.ds(row, 1), :],
                scratch.at[dst_slot, pl.ds(r, 1), :],
                sems.at[dst_slot],
            ).start()

    # Prime this chunk's own first step (runs once per chunk, so it is correct
    # no matter how the parallel axis is split across TensorCores).
    @pl.when(j == 0)
    def _():
        start_rows(step, slot)           # slot == 0 when j == 0

    # Prefetch the NEXT step's rows into the other slot while this step's
    # copies (issued one step ago) complete and are written back.
    @pl.when(j + 1 < steps_per_chunk)
    def _():
        start_rows(step + 1, 1 - slot)

    # All rows_per_step single-row copies for `slot` signal sems[slot]; DMA
    # semaphores count bytes, so one (rows_per_step, D)-shaped descriptor
    # (same dtype/shape as the scratch slot they filled) waits for exactly
    # their combined byte count.
    pltpu.make_async_copy(
        emb_hbm.at[pl.ds(0, rows_per_step), :],
        scratch.at[slot],
        sems.at[slot],
    ).wait()

    # One dense (R, D) tile write into the output block.
    out_ref[...] = scratch[slot]


def _round_up(x: int, m: int) -> int:
    return ((x + m - 1) // m) * m


# ----------------------------------------------------------------------------
# Wrapper: Pallas equivalent of Omnipath_Node2Vec.forward.
# ----------------------------------------------------------------------------
def node2vec_forward(emb: jax.Array,
                     batch: jax.Array | None = None,
                     *,
                     vmem_table_limit_bytes: int | None = None) -> jax.Array:
    if batch is None:
        # forward(None) returns the weight matrix (no compute).
        return emb

    num_nodes, embedding_dim = emb.shape
    b = int(batch.shape[0])
    itemsize = jnp.dtype(emb.dtype).itemsize
    if b == 0:
        return jnp.zeros((0, embedding_dim), emb.dtype)

    # --- generation-aware sizing ---------------------------------------
    try:
        vmem_cap = int(pltpu.get_tpu_info().vmem_capacity_bytes)
    except Exception:  # pragma: no cover - conservative fallback
        vmem_cap = 64 * 1024 * 1024
    if vmem_table_limit_bytes is None:
        # ~45 MiB on v5e/v6e (128 MiB VMEM), ~22 MiB on v7x (64 MiB per TC).
        vmem_table_limit_bytes = min(48 * 1024 * 1024, int(0.35 * vmem_cap))

    # --- rows gathered per grid step ------------------------------------
    sub = max(8, 32 // itemsize)            # sublane-dense minimum per dtype
    if b < sub:
        rows_per_step = b                   # block == full batch dim (legal)
    else:
        rows_per_step = min(64, (b // sub) * sub)
        if num_nodes >= sub:                # keep DMA descriptors in-bounds
            rows_per_step = min(rows_per_step, (num_nodes // sub) * sub)
        rows_per_step = max(rows_per_step, sub)

    nblocks = pl.cdiv(b, rows_per_step)
    padded_len = nblocks * rows_per_step

    # Clamp indices (defensive; valid indices unchanged). Only the tiny index
    # vector is padded so SMEM reads for the partial final block stay valid;
    # the output keeps its exact (b, D) shape.
    idx = jnp.clip(batch.astype(jnp.int32), 0, num_nodes - 1)
    if padded_len != b:
        idx = jnp.concatenate(
            [idx, jnp.zeros((padded_len - b,), dtype=jnp.int32)])

    out_shape = jax.ShapeDtypeStruct((b, embedding_dim), emb.dtype)
    table_bytes = num_nodes * embedding_dim * itemsize
    gather_bytes = b * embedding_dim * itemsize
    out_block_bytes = rows_per_step * embedding_dim * itemsize

    # Resident (Path A) when the table fits the VMEM budget; for mid-size
    # tables also require the gather to move a comparable amount of data,
    # otherwise streaming rows from HBM reads less overall.
    resident = table_bytes <= vmem_table_limit_bytes and (
        table_bytes <= (4 << 20) or table_bytes <= 8 * gather_bytes)

    if resident:
        # ----------------- Path A: resident-table gather -----------------
        vmem_limit = min(int(0.9 * vmem_cap),
                         max(32 << 20, table_bytes + 3 * out_block_bytes + (4 << 20)))
        grid_spec = pltpu.PrefetchScalarGridSpec(
            num_scalar_prefetch=1,                      # idx -> SMEM
            grid=(nblocks,),
            in_specs=[pl.BlockSpec(memory_space=pl.ANY)],   # table in HBM
            out_specs=pl.BlockSpec((rows_per_step, embedding_dim),
                                   lambda i, idx_ref: (i, 0)),
            scratch_shapes=[
                pltpu.VMEM((num_nodes, embedding_dim), emb.dtype),
                pltpu.SemaphoreType.DMA((1,)),
            ],
        )
        return pl.pallas_call(
            functools.partial(_resident_gather_kernel,
                              rows_per_step=rows_per_step),
            out_shape=out_shape,
            grid_spec=grid_spec,
            compiler_params=pltpu.CompilerParams(
                dimension_semantics=("arbitrary",),     # sequential: the
                # one-shot table copy at step 0 must precede every gather.
                vmem_limit_bytes=int(vmem_limit)),
            cost_estimate=pl.CostEstimate(
                flops=0, transcendentals=0,
                bytes_accessed=table_bytes + gather_bytes + padded_len * 4),
        )(idx, emb)

    # --------------- Path B: prefetched HBM row-DMA gather ----------------
    num_chunks = 2 if (nblocks % 2 == 0 and nblocks >= 4) else 1
    steps_per_chunk = nblocks // num_chunks

    grid_spec = pltpu.PrefetchScalarGridSpec(
        num_scalar_prefetch=1,                          # idx -> SMEM
        grid=(num_chunks, steps_per_chunk),
        in_specs=[pl.BlockSpec(memory_space=pl.ANY)],   # raw HBM table ref
        out_specs=pl.BlockSpec(
            (rows_per_step, embedding_dim),
            lambda p, j, idx_ref: (p * steps_per_chunk + j, 0)),
        scratch_shapes=[
            pltpu.VMEM((2, rows_per_step, embedding_dim), emb.dtype),
            pltpu.SemaphoreType.DMA((2,)),
        ],
    )
    return pl.pallas_call(
        functools.partial(_hbm_gather_kernel,
                          rows_per_step=rows_per_step,
                          steps_per_chunk=steps_per_chunk),
        out_shape=out_shape,
        grid_spec=grid_spec,
        compiler_params=pltpu.CompilerParams(
            dimension_semantics=("parallel", "arbitrary")),
        cost_estimate=pl.CostEstimate(
            flops=0, transcendentals=0,
            bytes_accessed=2 * gather_bytes + padded_len * 4),
    )(idx, emb)


if __name__ == "__main__":
    # Deterministic setup consistent with the module's __init__:
    #   Embedding(num_nodes, embedding_dim), reset_parameters() -> N(0, 1).
    num_nodes = 64
    embedding_dim = 128

    key = jax.random.PRNGKey(0)
    k_emb, k_small, k_big = jax.random.split(key, 3)
    emb_weight = jax.random.normal(
        k_emb, (num_nodes, embedding_dim), dtype=jnp.float32)

    test_batches = {
        # 13: not a multiple of 8 -> exercises the partial final block.
        "b13": jax.random.randint(k_small, (13,), 0, num_nodes, dtype=jnp.int32),
        # 203: 4 blocks of 64 -> exercises the 2-chunk parallel grid, the
        # cross-step DMA prefetch, and a partial (11-row) final block.
        "b203": jax.random.randint(k_big, (203,), 0, num_nodes, dtype=jnp.int32),
    }

    for name, batch in test_batches.items():
        ref = emb_weight[batch]

        # Path A: resident-table fast path (default, table fits budget).
        out_a = jax.block_until_ready(node2vec_forward(emb_weight, batch))
        assert out_a.shape == ref.shape and out_a.dtype == ref.dtype
        assert bool(jnp.allclose(out_a, ref)), f"resident-path mismatch ({name})"

        # Path B: force the large-table HBM row-DMA path.
        out_b = jax.block_until_ready(
            node2vec_forward(emb_weight, batch, vmem_table_limit_bytes=0))
        assert out_b.shape == ref.shape
        assert bool(jnp.allclose(out_b, ref)), f"DMA-path mismatch ({name})"

    # forward(None): returns the full embedding table (glue path, no kernel).
    full = jax.block_until_ready(node2vec_forward(emb_weight, None))
    assert full.shape == (num_nodes, embedding_dim)

    # TODO(synk): pos_sample/neg_sample/sample/loader depend on torch-cluster
    # random walks + a host DataLoader, and loss() is the training objective;
    # they are not part of forward() and are not translated here.
    print("KERNEL_OK")
</pallas_src>

<mosaic_0001>
module attributes {stable_mosaic.version = 11 : i64} {
  func.func @_resident_gather_kernel(%arg0: i32, %arg1: memref<16xi32, #tpu.memory_space<smem>>, %arg2: memref<64x128xf32, #tpu.memory_space<any>>, %arg3: memref<8x128xf32, #tpu.memory_space<vmem>>, %arg4: memref<64x128xf32, #tpu.memory_space<vmem>>, %arg5: memref<1x!tpu.dma_semaphore, #tpu.memory_space<semaphore_mem>>) attributes {dimension_semantics = [#tpu.dimension_semantics<arbitrary>], iteration_bounds = array<i64: 2>, scalar_prefetch = 1 : i64, scratch_operands = 2 : i64, tpu.core_type = #tpu.core_type<tc>, window_params = [{}, {transform_indices = @transform_1, window_bounds = array<i64: 8, 128>}]} {
    %c0_i32 = arith.constant 0 : i32
    %0 = arith.cmpi eq, %arg0, %c0_i32 : i32
    %1 = arith.extui %0 : i1 to i32
    %c0_i32_0 = arith.constant 0 : i32
    %2 = arith.cmpi ne, %1, %c0_i32_0 : i32
    scf.if %2 {
      %c0_i32_18 = arith.constant 0 : i32
      %53 = tpu.memref_slice %arg5[%c0_i32_18] : memref<1x!tpu.dma_semaphore, #tpu.memory_space<semaphore_mem>> -> memref<1x!tpu.dma_semaphore, #tpu.memory_space<semaphore_mem>>
      %54 = tpu.memref_squeeze %53 : memref<1x!tpu.dma_semaphore, #tpu.memory_space<semaphore_mem>> -> memref<!tpu.dma_semaphore, #tpu.memory_space<semaphore_mem>>
      tpu.enqueue_dma source(%arg2 : memref<64x128xf32, #tpu.memory_space<any>>) target(%arg4 : memref<64x128xf32, #tpu.memory_space<vmem>>) target_semaphore(%54 : memref<!tpu.dma_semaphore, #tpu.memory_space<semaphore_mem>>)
      %c0_i32_19 = arith.constant 0 : i32
      %55 = tpu.memref_slice %arg5[%c0_i32_19] : memref<1x!tpu.dma_semaphore, #tpu.memory_space<semaphore_mem>> -> memref<1x!tpu.dma_semaphore, #tpu.memory_space<semaphore_mem>>
      %56 = tpu.memref_squeeze %55 : memref<1x!tpu.dma_semaphore, #tpu.memory_space<semaphore_mem>> -> memref<!tpu.dma_semaphore, #tpu.memory_space<semaphore_mem>>
      tpu.wait_dma2 semaphore(%56 : memref<!tpu.dma_semaphore, #tpu.memory_space<semaphore_mem>>) src(%arg2 : memref<64x128xf32, #tpu.memory_space<any>>) dst(%arg4 : memref<64x128xf32, #tpu.memory_space<vmem>>)
    } else {
    }
    %c8_i32 = arith.constant 8 : i32
    %3 = arith.muli %arg0, %c8_i32 : i32
    %4 = tpu.assume_multiple %3, 8 : i32
    %c0_i32_1 = arith.constant 0 : i32
    %5 = arith.addi %4, %c0_i32_1 : i32
    %6 = arith.index_cast %5 : i32 to index
    %7 = memref.load %arg1[%6] : memref<16xi32, #tpu.memory_space<smem>>
    %8 = arith.index_cast %7 : i32 to index
    %c0 = arith.constant 0 : index
    %9 = vector.load %arg4[%8, %c0] : memref<64x128xf32, #tpu.memory_space<vmem>>, vector<1x128xf32>
    %c0_2 = arith.constant 0 : index
    %c0_3 = arith.constant 0 : index
    %10 = vector.load %arg3[%c0_2, %c0_3] : memref<8x128xf32, #tpu.memory_space<vmem>>, vector<1x128xf32>
    tpu.vector_store %arg3[%c0_2, %c0_3], %9 {strides = array<i32>} : memref<8x128xf32, #tpu.memory_space<vmem>>, vector<1x128xf32>,
    %c1_i32 = arith.constant 1 : i32
    %11 = arith.addi %4, %c1_i32 : i32
    %12 = arith.index_cast %11 : i32 to index
    %13 = memref.load %arg1[%12] : memref<16xi32, #tpu.memory_space<smem>>
    %14 = arith.index_cast %13 : i32 to index
    %c0_4 = arith.constant 0 : index
    %15 = vector.load %arg4[%14, %c0_4] : memref<64x128xf32, #tpu.memory_space<vmem>>, vector<1x128xf32>
    %c1 = arith.constant 1 : index
    %c0_5 = arith.constant 0 : index
    %16 = vector.load %arg3[%c1, %c0_5] : memref<8x128xf32, #tpu.memory_space<vmem>>, vector<1x128xf32>
    tpu.vector_store %arg3[%c1, %c0_5], %15 {strides = array<i32>} : memref<8x128xf32, #tpu.memory_space<vmem>>, vector<1x128xf32>,
    %c2_i32 = arith.constant 2 : i32
    %17 = arith.addi %4, %c2_i32 : i32
    %18 = arith.index_cast %17 : i32 to index
    %19 = memref.load %arg1[%18] : memref<16xi32, #tpu.memory_space<smem>>
    %20 = arith.index_cast %19 : i32 to index
    %c0_6 = arith.constant 0 : index
    %21 = vector.load %arg4[%20, %c0_6] : memref<64x128xf32, #tpu.memory_space<vmem>>, vector<1x128xf32>
    %c2 = arith.constant 2 : index
    %c0_7 = arith.constant 0 : index
    %22 = vector.load %arg3[%c2, %c0_7] : memref<8x128xf32, #tpu.memory_space<vmem>>, vector<1x128xf32>
    tpu.vector_store %arg3[%c2, %c0_7], %21 {strides = array<i32>} : memref<8x128xf32, #tpu.memory_space<vmem>>, vector<1x128xf32>,
    %c3_i32 = arith.constant 3 : i32
    %23 = arith.addi %4, %c3_i32 : i32
    %24 = arith.index_cast %23 : i32 to index
    %25 = memref.load %arg1[%24] : memref<16xi32, #tpu.memory_space<smem>>
    %26 = arith.index_cast %25 : i32 to index
    %c0_8 = arith.constant 0 : index
    %27 = vector.load %arg4[%26, %c0_8] : memref<64x128xf32, #tpu.memory_space<vmem>>, vector<1x128xf32>
    %c3 = arith.constant 3 : index
    %c0_9 = arith.constant 0 : index
    %28 = vector.load %arg3[%c3, %c0_9] : memref<8x128xf32, #tpu.memory_space<vmem>>, vector<1x128xf32>
    tpu.vector_store %arg3[%c3, %c0_9], %27 {strides = array<i32>} : memref<8x128xf32, #tpu.memory_space<vmem>>, vector<1x128xf32>,
    %c4_i32 = arith.constant 4 : i32
    %29 = arith.addi %4, %c4_i32 : i32
    %30 = arith.index_cast %29 : i32 to index
    %31 = memref.load %arg1[%30] : memref<16xi32, #tpu.memory_space<smem>>
    %32 = arith.index_cast %31 : i32 to index
    %c0_10 = arith.constant 0 : index
    %33 = vector.load %arg4[%32, %c0_10] : memref<64x128xf32, #tpu.memory_space<vmem>>, vector<1x128xf32>
    %c4 = arith.constant 4 : index
    %c0_11 = arith.constant 0 : index
    %34 = vector.load %arg3[%c4, %c0_11] : memref<8x128xf32, #tpu.memory_space<vmem>>, vector<1x128xf32>
    tpu.vector_store %arg3[%c4, %c0_11], %33 {strides = array<i32>} : memref<8x128xf32, #tpu.memory_space<vmem>>, vector<1x128xf32>,
    %c5_i32 = arith.constant 5 : i32
    %35 = arith.addi %4, %c5_i32 : i32
    %36 = arith.index_cast %35 : i32 to index
    %37 = memref.load %arg1[%36] : memref<16xi32, #tpu.memory_space<smem>>
    %38 = arith.index_cast %37 : i32 to index
    %c0_12 = arith.constant 0 : index
    %39 = vector.load %arg4[%38, %c0_12] : memref<64x128xf32, #tpu.memory_space<vmem>>, vector<1x128xf32>
    %c5 = arith.constant 5 : index
    %c0_13 = arith.constant 0 : index
    %40 = vector.load %arg3[%c5, %c0_13] : memref<8x128xf32, #tpu.memory_space<vmem>>, vector<1x128xf32>
    tpu.vector_store %arg3[%c5, %c0_13], %39 {strides = array<i32>} : memref<8x128xf32, #tpu.memory_space<vmem>>, vector<1x128xf32>,
    %c6_i32 = arith.constant 6 : i32
    %41 = arith.addi %4, %c6_i32 : i32
    %42 = arith.index_cast %41 : i32 to index
    %43 = memref.load %arg1[%42] : memref<16xi32, #tpu.memory_space<smem>>
    %44 = arith.index_cast %43 : i32 to index
    %c0_14 = arith.constant 0 : index
    %45 = vector.load %arg4[%44, %c0_14] : memref<64x128xf32, #tpu.memory_space<vmem>>, vector<1x128xf32>
    %c6 = arith.constant 6 : index
    %c0_15 = arith.constant 0 : index
    %46 = vector.load %arg3[%c6, %c0_15] : memref<8x128xf32, #tpu.memory_space<vmem>>, vector<1x128xf32>
    tpu.vector_store %arg3[%c6, %c0_15], %45 {strides = array<i32>} : memref<8x128xf32, #tpu.memory_space<vmem>>, vector<1x128xf32>,
    %c7_i32 = arith.constant 7 : i32
    %47 = arith.addi %4, %c7_i32 : i32
    %48 = arith.index_cast %47 : i32 to index
    %49 = memref.load %arg1[%48] : memref<16xi32, #tpu.memory_space<smem>>
    %50 = arith.index_cast %49 : i32 to index
    %c0_16 = arith.constant 0 : index
    %51 = vector.load %arg4[%50, %c0_16] : memref<64x128xf32, #tpu.memory_space<vmem>>, vector<1x128xf32>
    %c7 = arith.constant 7 : index
    %c0_17 = arith.constant 0 : index
    %52 = vector.load %arg3[%c7, %c0_17] : memref<8x128xf32, #tpu.memory_space<vmem>>, vector<1x128xf32>
    tpu.vector_store %arg3[%c7, %c0_17], %51 {strides = array<i32>} : memref<8x128xf32, #tpu.memory_space<vmem>>, vector<1x128xf32>,
    return
  }
  func.func @transform_1(%arg0: i32, %arg1: memref<16xi32, #tpu.memory_space<smem>>) -> (i32, i32) {
    %c0_i32 = arith.constant 0 : i32
    %c0_i32_0 = arith.constant 0 : i32
    return %arg0, %c0_i32 : i32, i32
  }
}

</mosaic_0001>

<llo_original>
// kernel: tpu_custom_call.1
$region0: #{tpu_custom_call.1}
  #allocation0 [shape = 'u32[]', space=smem, size = 0x4, offset = 0x4, fixed_abs, tag = 'smem constant byte address 0x4 - core index']
  #allocation1 [shape = 'u32[144,128]{1,0:T(1,128)}', space=vmem, size = 0x12000, scoped, tag = 'internal scratch']
  #allocation2 [shape = 'f32[64,128]{1,0:T(8,128)}', space=vmem, size = 0x8000, scoped, tag = 'scratch operand']
  #allocation3 [shape = 's32[1]{0}', space=sflag, size = 0x4, scoped, tag = 'scratch operand']
  #allocation4 [shape = 's32[1]{0}', space=sflag, size = 0x4, scoped, tag = 'scoped memory for tpu_custom_call.1']
  #allocation5 [shape = 'u8[512]{0}', space=smem, size = 0x200, scoped, tag = 'prefetched SMEM operand 0']
  #allocation8 [shape = 's32[]', space=sflag, size = 0x4, offset = 0, fixed_abs, tag = 'sflag constant byte address 0x0 - dummy sync flag']
  #allocation9 [shape = 's32[]', space=sflag, size = 0x4, offset = 0, fixed_abs, tag = 'sflag constant byte address 0x0 - dummy sync flag']
  #allocation10 [shape = 'u32[]', space=smem, size = 0x4, offset = 0x44, fixed_abs, tag = 'smem constant byte address 0x44 - assertion arg 0']
  #allocation11 [shape = 'u32[]', space=smem, size = 0x4, offset = 0x48, fixed_abs, tag = 'smem constant byte address 0x48 - assertion arg 1']
  %s0 = inlined_call_operand.hbm [shape: s32[16], index: 0, kind: input, shape index: {}]
  %s1 = inlined_call_operand.hbm [shape: f32[64,128], index: 1, kind: input, shape index: {}]
  %s2 = inlined_call_operand.hbm [shape: f32[13,128], index: 2, kind: output, shape index: {}]
  %s3 = sld [smem:[#allocation0]]
  $region33: #{tpu_custom_call.1} parent=0
    _
  %s5 = ssub.s32 1, %s3
  %s6 = scalar_select 0, %s5, %s3
  %8 = dma.hbm_to_smem %s0, 16, [#allocation5], [#allocation4]
  %9 = dma.done [#allocation4], 16
  %10 = sfence
  $region1: #{tpu_custom_call.1} parent=0
    #allocation6 [shape = 'u8[8192]{0}', space=vmem, size = 0x2000, scoped, tag = 'output window, operand 0']
    #allocation7 [shape = 's32[2]{0}', space=sflag, size = 0x8, scoped, tag = 'scoped memory for tpu_custom_call.1']
    %11 = vsyncpa [#allocation7], 0
    %s12 = scalar_lea.sflag [#allocation7], 1
    %13 = vsyncpa %s12, 0
    loop: start=0, step=1, limit=3
    $region2: #{tpu_custom_call.1} parent=1 // loop_pre_header
      _
    $region3: #{tpu_custom_call.1} parent=1 // loop_header
      %s15 = sphi 0, %s19
      %p16 = scmp.ge.s32.totalorder %s15, 3
      %s24 = sphi 0, %s26
      %s27 = sphi 0, %s24
      %s37 = sphi 0, %s27
    $region4: #{tpu_custom_call.1} parent=1 // loop_header_branch
      %18 = sbr.rel (%p16) target = $region8
    $region5: #{tpu_custom_call.1} parent=1 // loop_body
      %s20 = ssub.s32 %s15, 1
      %s21 = sadd.s32 %s15, 1
      %s22 = ssub.s32 %s15, %s21
      %p23 = scmp.eq.s32.totalorder %s22, 0
      %s25 = sadd.s32 %s24, 1
      %s26 = scalar_select %p23, %s24, %s25
      %p28 = pneg %p23
      %p29 = scmp.eq.s32.totalorder %s15, 1
      %p30 = por %p28, %p29
      %p31 = scmp.ne.s32.totalorder %s24, %s27
      %p32 = scmp.eq.s32.totalorder %s15, 0
      %p33 = por %p31, %p32
      %p34 = scmp.ne.s32.totalorder %s24, %s27
      %p35 = scmp.eq.s32.totalorder %s20, 1
      %p36 = por %p34, %p35
      %p38 = scmp.ne.s32.totalorder %s27, %s37
      %p39 = scmp.eq.s32.totalorder %s20, 0
      %p40 = por %p38, %p39
      %p41 = scmp.lt.s32.totalorder %s15, 2
      // Predicated region
      $region9: #{tpu_custom_call.1} parent=5 // pred_check
        %p42 = pneg %p41
      $region10: #{tpu_custom_call.1} parent=5 // pred_check_branch
        %44 = sbr.rel (%p42) target = $region12
      $region11: #{tpu_custom_call.1} parent=5 // pred_region
        %p45 = pneg %p33
        %p46 = pneg %p30
        %s47 = sand.u32 %s24, 1
        %s48 = scalar_lea.sflag [#allocation7], %s47
        %s49 = sand.u32 %s24, 1
        %s50 = smul.addr %s49, 8
        %s51 = scalar_lea.vmem [#allocation6], %s50
        %p52 = scmp.eq.s32.totalorder %s15, 0
        // Predicated region
        $region13: #{tpu_custom_call.1} parent=11 // pred_check
          %p53 = pneg %p52
        $region14: #{tpu_custom_call.1} parent=11 // pred_check_branch
          %55 = sbr.rel (%p53) target = $region16
        $region15: #{tpu_custom_call.1} parent=11 // pred_region
          // Predicated region
          $region17: #{tpu_custom_call.1} parent=15 // pred_check
            _
          $region18: #{tpu_custom_call.1} parent=15 // pred_check_branch
            %57 = sbr.rel target = $region20
          $region19: #{tpu_custom_call.1} parent=15 // pred_region
            %58 = sst [smem:[#allocation10]] [#allocation9]
            %59 = sst [smem:[#allocation11]] [#allocation8]
          $region20: #{tpu_custom_call.1} parent=15 // pred_fallthru
            _
          %61 = shalt.err (0)
          %s63 = sshll.u32 [#allocation2], 4
          %s64 = int_to_ptr.vmem [resolvable:$true] %s63
          %66 = dma.hbm_to_vmem [thread:$0]  %s1, 1024, %s64, [#allocation3]
          %s67 = smul.u32 64, 1
          %s68 = sshll.u32 %s67, 4
          %69 = dma.done [#allocation3], %s68
        $region16: #{tpu_custom_call.1} parent=11 // pred_fallthru
          _
        %s70 = smul.u32 %s15, 8
        %s71 = sld [smem:[#allocation5 + %s70]]
        %s72 = scalar_lea.vmem [#allocation2], %s71
        %v73 = vld [vmem:[%s72] sm:$0x1]
        %74 = vst [vmem:[%s51] sm:$0x1] %v73
        %s75 = sadd.s32 %s70, 1
        %s76 = sld [smem:[#allocation5 + %s75]]
        %s77 = scalar_lea.vmem [#allocation2], %s76
        %v78 = vld [vmem:[%s77] sm:$0x1]
        %79 = vst [vmem:[%s51 + $0x1] sm:$0x1] %v78
        %s80 = sadd.s32 %s70, 2
        %s81 = sld [smem:[#allocation5 + %s80]]
        %s82 = scalar_lea.vmem [#allocation2], %s81
        %v83 = vld [vmem:[%s82] sm:$0x1]
        %84 = vst [vmem:[%s51 + $0x2] sm:$0x1] %v83
        %s85 = sadd.s32 %s70, 3
        %s86 = sld [smem:[#allocation5 + %s85]]
        %s87 = scalar_lea.vmem [#allocation2], %s86
        %v88 = vld [vmem:[%s87] sm:$0x1]
        %89 = vst [vmem:[%s51 + $0x3] sm:$0x1] %v88
        %s90 = sadd.s32 %s70, 4
        %s91 = sld [smem:[#allocation5 + %s90]]
        %s92 = scalar_lea.vmem [#allocation2], %s91
        %v93 = vld [vmem:[%s92] sm:$0x1]
        %94 = vst [vmem:[%s51 + $0x4] sm:$0x1] %v93
        %s95 = sadd.s32 %s70, 5
        %s96 = sld [smem:[#allocation5 + %s95]]
        %s97 = scalar_lea.vmem [#allocation2], %s96
        %v98 = vld [vmem:[%s97] sm:$0x1]
        %99 = vst [vmem:[%s51 + $0x5] sm:$0x1] %v98
        %s100 = sadd.s32 %s70, 6
        %s101 = sld [smem:[#allocation5 + %s100]]
        %s102 = scalar_lea.vmem [#allocation2], %s101
        %v103 = vld [vmem:[%s102] sm:$0x1]
        %104 = vst [vmem:[%s51 + $0x6] sm:$0x1] %v103
        %s105 = sadd.s32 %s70, 7
        %s106 = sld [smem:[#allocation5 + %s105]]
        %s107 = scalar_lea.vmem [#allocation2], %s106
        %v108 = vld [vmem:[%s107] sm:$0x1]
        %109 = vst [vmem:[%s51 + $0x7] sm:$0x1] %v108
        %s110 = sand.u32 %s24, 1
        %s111 = scalar_lea.sflag [#allocation7], %s110
        %s112 = sand.u32 %s24, 1
        %s113 = smul.addr %s112, 8
        %s114 = scalar_lea.vmem [#allocation6], %s113
        // Predicated region
        $region21: #{tpu_custom_call.1} parent=11 // pred_check
          %p115 = pneg %p30
        $region22: #{tpu_custom_call.1} parent=11 // pred_check_branch
          %117 = sbr.rel (%p115) target = $region24
        $region23: #{tpu_custom_call.1} parent=11 // pred_region
          %s119 = ssub.s32 128, 128
          %120 = vsyncadd %s111, %s119
          %s121 = smul.addr %s15, 128
          %s122 = scalar_lea.hbm %s2, %s121
          %s124 = sshll.u32 %s114, 4
          %s125 = int_to_ptr.vmem [resolvable:$true] %s124
          %127 = dma.vmem_to_hbm [thread:$0]  %s125, 128, %s122, %s111
        $region24: #{tpu_custom_call.1} parent=11 // pred_fallthru
          _
      $region12: #{tpu_custom_call.1} parent=5 // pred_fallthru
        _
      %p128 = scmp.le.s32.totalorder 1, %s15
      // Predicated region
      $region25: #{tpu_custom_call.1} parent=5 // pred_check
        %p129 = pneg %p128
      $region26: #{tpu_custom_call.1} parent=5 // pred_check_branch
        %131 = sbr.rel (%p129) target = $region28
      $region27: #{tpu_custom_call.1} parent=5 // pred_region
        %s132 = ssub.s32 %s15, 1
        // Predicated region
        $region29: #{tpu_custom_call.1} parent=27 // pred_check
          %p133 = pneg %p36
        $region30: #{tpu_custom_call.1} parent=27 // pred_check_branch
          %135 = sbr.rel (%p133) target = $region32
        $region31: #{tpu_custom_call.1} parent=27 // pred_region
          %s136 = sand.u32 %s27, 1
          %s137 = scalar_lea.sflag [#allocation7], %s136
          %s138 = sand.u32 %s27, 1
          %s139 = smul.addr %s138, 8
          %s140 = scalar_lea.vmem [#allocation6], %s139
          %141 = dma.done %s137, 128
        $region32: #{tpu_custom_call.1} parent=27 // pred_fallthru
          _
      $region28: #{tpu_custom_call.1} parent=5 // pred_fallthru
        _
    $region6: #{tpu_custom_call.1} parent=1 // loop_footer
      %s19 = sadd.s32 1, %s15
    $region7: #{tpu_custom_call.1} parent=1 // loop_footer_branch
      %14 = sbr.rel target = $region3
    $region8: #{tpu_custom_call.1} parent=1 // loop_exit
      _
    %142 = vsyncpa [#allocation7], 1
    %s143 = scalar_lea.sflag [#allocation7], 1
    %144 = vsyncpa %s143, 1
  %145 = vsyncmov [#allocation3]
  %s146 = vpop.sfrf %145
  %p147 = scmp.eq.s32.totalorder %s146, 0
  %p148 = pneg %p147
  %150 = shalt.err (%p148)

</llo_original>
